<compile_context>
chip_gen: v5e
topology: v5e:2x2
jax: 0.10.0
libtpu: 0.0.40
codegen_flags: <defaults>
</compile_context>

<pallas_src>
import jax
import jax.numpy as jnp
from jax.experimental import pallas as pl
from jax.experimental.pallas import tpu as pltpu

SKIP_CLASSES = (2, 3, 4)

# Slab row layout.
ROW_SEG_CLASS = 4          # == cluster_label[:, -1]
ROW_GROUP_ID = 5           # == cluster_label[:, 5]
ROW_MASK = 6               # class_mask as 0.0 / 1.0
ROW_PAD = 7                # always zero
SLAB_ROWS = 8              # exactly one f32 (8, 128) tile high

# Row picks for downstream consumers (instead of materializing (N, 5) tensors):
SEG_ROWS = (0, 1, 2, 3, ROW_SEG_CLASS)   # == label[:, [0, 1, 2, 3, -1]]
GRP_ROWS = (0, 1, 2, 3, ROW_GROUP_ID)    # == label[:, [0, 1, 2, 3,  5]]


def _round_up(x, m):
    return (x + m - 1) // m * m


def _spice_mask_kernel(label_ref, slab_ref):
    """label_ref: (C, TILE_N) float, points on the 128-lane axis."""
    x = label_ref[...]
    c = x.shape[0]
    seg_class = x[c - 1:c, :]                       # (1, TILE_N) == label[:, -1]

    # class_mask: keep points whose segmentation class is not in SKIP_CLASSES.
    # NOTE: exact float compare, same semantics as the PyTorch `!=` on float
    # labels; class ids must be exactly-representable integers in this dtype.
    keep = seg_class != SKIP_CLASSES[0]
    for sc in SKIP_CLASSES[1:]:
        keep = jnp.logical_and(keep, seg_class != sc)
    mf = keep.astype(x.dtype)                       # (1, TILE_N), broadcasts over rows

    # Single lane-dense, (8,128)-aligned store: coords, seg class, group id,
    # mask, zero pad.  One output stream, no masked partial stores.
    slab_ref[...] = jnp.concatenate(
        [x[0:4, :] * mf,          # rows 0..3: coord columns (written once)
         seg_class * mf,          # row 4: segmentation class
         x[5:6, :] * mf,          # row 5: group / cluster id
         mf,                      # row 6: class_mask
         jnp.zeros_like(mf)],     # row 7: padding
        axis=0)


def spice_class_mask_cn(label_cn, *, tile_n=131072):
    """SPICELoss label-filtering hot path on a (C, N) label slab.

    Args:
      label_cn: (C, N) float array, N points on the last (lane) axis.  Columns
        of the PyTorch (N, C) tensor are rows here: rows 0..3 = coords,
        row 5 = group id, row C-1 = segmentation class.  C must be >= 6.
      tile_n: points per grid step (rounded to a multiple of 128).  Defaults
        suit v6e/v7x; v5e gains nothing beyond ~65536.

    Returns:
      (SLAB_ROWS, N) float slab; see module docstring for the row layout.
    """
    C, N = label_cn.shape
    if C < 6:
        raise ValueError(f"label layout requires C >= 6 columns, got C={C}")
    if not jnp.issubdtype(label_cn.dtype, jnp.floating):
        raise ValueError(f"expected a floating label tensor, got {label_cn.dtype}")

    tile_n = _round_up(max(128, min(tile_n, _round_up(max(N, 1), 128))), 128)
    itemsize = jnp.dtype(label_cn.dtype).itemsize

    return pl.pallas_call(
        _spice_mask_kernel,
        out_shape=jax.ShapeDtypeStruct((SLAB_ROWS, N), label_cn.dtype),
        grid=(pl.cdiv(N, tile_n),),
        in_specs=[pl.BlockSpec((C, tile_n), lambda i: (0, i))],
        out_specs=pl.BlockSpec((SLAB_ROWS, tile_n), lambda i: (0, i)),
        compiler_params=pltpu.CompilerParams(
            dimension_semantics=("parallel",),          # shard N across v7x's 2 TCs
            vmem_limit_bytes=64 * 1024 * 1024),
        cost_estimate=pl.CostEstimate(
            flops=10 * N,
            transcendentals=0,
            bytes_accessed=(C + SLAB_ROWS) * N * itemsize),
    )(label_cn)


def spice_class_mask(cluster_label, *, tile_n=131072):
    """Compatibility shim for the PyTorch (N, C) layout.

    NOTE: the transpose below is one extra full HBM read+write pass (it roughly
    doubles end-to-end traffic of this memory-bound op).  Prefer keeping the
    labels in (C, N) layout upstream and calling `spice_class_mask_cn`.
    """
    return spice_class_mask_cn(jnp.transpose(cluster_label), tile_n=tile_n)


def slab_class_mask(slab):
    """Boolean class_mask view of the slab (materializes an (N,) bool array)."""
    return slab[ROW_MASK] != 0


def _reference_slab(cluster_label):
    """Pure-JAX reference in (rows, N) form, from the PyTorch (N, C) layout."""
    seg_class = cluster_label[:, -1]
    keep = jnp.ones_like(seg_class, dtype=bool)
    for c in SKIP_CLASSES:
        keep = keep & (seg_class != c)
    mf = keep.astype(cluster_label.dtype)
    rows = [cluster_label[:, j] * mf for j in range(4)]
    rows += [seg_class * mf, cluster_label[:, 5] * mf, mf, jnp.zeros_like(mf)]
    return keep, jnp.stack(rows, axis=0)


if __name__ == "__main__":
    key = jax.random.PRNGKey(0)
    N, C = 1000, 8   # small synthetic point-cloud label tensor (ragged vs tile)

    k1, k2, k3, k4 = jax.random.split(key, 4)
    coords = jax.random.normal(k1, (N, 4), dtype=jnp.float32)                # cols 0..3
    extra = jax.random.normal(k2, (N, 1), dtype=jnp.float32)                 # col 4
    group_id = jax.random.randint(k3, (N, 1), 0, 10).astype(jnp.float32)     # col 5
    pad_col = jnp.zeros((N, 1), dtype=jnp.float32)                           # col 6
    seg_class = jax.random.randint(k4, (N, 1), 0, 5).astype(jnp.float32)     # col 7 (= -1)
    cluster_label = jnp.concatenate(
        [coords, extra, group_id, pad_col, seg_class], axis=1)               # (N, C)

    # Preferred path: upstream provides the (C, N) slab layout (derived once here).
    label_cn = jnp.transpose(cluster_label)

    # Small tile -> exercises a multi-step grid and the ragged (non-multiple) tail.
    slab = spice_class_mask_cn(label_cn, tile_n=256)
    # Compatibility (N, C) path and default-tile single-block path.
    slab_compat = spice_class_mask(cluster_label, tile_n=256)
    slab_default = spice_class_mask_cn(label_cn)
    jax.block_until_ready((slab, slab_compat, slab_default))

    keep_ref, slab_ref = _reference_slab(cluster_label)
    assert slab.shape == (SLAB_ROWS, N)
    assert jnp.array_equal(slab_class_mask(slab), keep_ref), "mask mismatch"
    assert jnp.allclose(slab, slab_ref), "slab mismatch"
    assert jnp.allclose(slab_compat, slab_ref), "compat-path slab mismatch"
    assert jnp.allclose(slab_default, slab_ref), "default-tile slab mismatch"

    # Tie back to the PyTorch column picks (materialized only for this check).
    mf = keep_ref[:, None].astype(jnp.float32)
    seg_ref = jnp.concatenate([cluster_label[:, 0:4], cluster_label[:, C - 1:C]], 1) * mf
    grp_ref = jnp.concatenate([cluster_label[:, 0:4], cluster_label[:, 5:6]], 1) * mf
    assert jnp.allclose(slab[jnp.array(SEG_ROWS)].T, seg_ref), "segment_label mismatch"
    assert jnp.allclose(slab[jnp.array(GRP_ROWS)].T, grp_ref), "group_label mismatch"

    print("KERNEL_OK")
</pallas_src>

<mosaic_0001>
module attributes {stable_mosaic.version = 11 : i64} {
  func.func @_spice_mask_kernel(%arg0: i32, %arg1: memref<8x256xf32, #tpu.memory_space<vmem>>, %arg2: memref<8x256xf32, #tpu.memory_space<vmem>>) attributes {dimension_semantics = [#tpu.dimension_semantics<parallel>], iteration_bounds = array<i64: 4>, scalar_prefetch = 0 : i64, scratch_operands = 0 : i64, tpu.core_type = #tpu.core_type<tc>, window_params = [{transform_indices = @transform_0, window_bounds = array<i64: 8, 256>}, {transform_indices = @transform_1, window_bounds = array<i64: 8, 256>}]} {
    %c0 = arith.constant 0 : index
    %c0_0 = arith.constant 0 : index
    %0 = vector.load %arg1[%c0, %c0_0] : memref<8x256xf32, #tpu.memory_space<vmem>>, vector<8x256xf32>
    %1 = vector.extract_strided_slice %0 {offsets = [7, 0], sizes = [1, 256], strides = [1, 1]} : vector<8x256xf32> to vector<1x256xf32>
    %cst = arith.constant 2.000000e+00 : f32
    %2 = vector.broadcast %cst : f32 to vector<1x256xf32>
    %3 = arith.cmpf one, %1, %2 : vector<1x256xf32>
    %cst_1 = arith.constant 3.000000e+00 : f32
    %4 = vector.broadcast %cst_1 : f32 to vector<1x256xf32>
    %5 = arith.cmpf one, %1, %4 : vector<1x256xf32>
    %6 = arith.andi %3, %5 : vector<1x256xi1>
    %cst_2 = arith.constant 4.000000e+00 : f32
    %7 = vector.broadcast %cst_2 : f32 to vector<1x256xf32>
    %8 = arith.cmpf one, %1, %7 : vector<1x256xf32>
    %9 = arith.andi %6, %8 : vector<1x256xi1>
    %10 = arith.extui %9 : vector<1x256xi1> to vector<1x256xi32>
    %11 = arith.sitofp %10 : vector<1x256xi32> to vector<1x256xf32>
    %12 = vector.extract_strided_slice %0 {offsets = [0, 0], sizes = [4, 256], strides = [1, 1]} : vector<8x256xf32> to vector<4x256xf32>
    %13 = vector.broadcast %11 : vector<1x256xf32> to vector<4x256xf32>
    %14 = arith.mulf %12, %13 : vector<4x256xf32>
    %15 = arith.mulf %1, %11 : vector<1x256xf32>
    %16 = vector.extract_strided_slice %0 {offsets = [5, 0], sizes = [1, 256], strides = [1, 1]} : vector<8x256xf32> to vector<1x256xf32>
    %17 = arith.mulf %16, %11 : vector<1x256xf32>
    %cst_3 = arith.constant 0.000000e+00 : f32
    %18 = vector.broadcast %cst_3 : f32 to vector<1x256xf32>
    %19 = tpu.concatenate %14, %15, %17, %11, %18 in 0 : vector<4x256xf32>, vector<1x256xf32>, vector<1x256xf32>, vector<1x256xf32>, vector<1x256xf32> -> vector<8x256xf32>
    %c0_4 = arith.constant 0 : index
    %c0_5 = arith.constant 0 : index
    %20 = vector.load %arg2[%c0_4, %c0_5] : memref<8x256xf32, #tpu.memory_space<vmem>>, vector<8x256xf32>
    tpu.vector_store %arg2[%c0_4, %c0_5], %19 {strides = array<i32>} : memref<8x256xf32, #tpu.memory_space<vmem>>, vector<8x256xf32>,
    return
  }
  func.func @transform_0(%arg0: i32) -> (i32, i32) {
    %c0_i32 = arith.constant 0 : i32
    %c0_i32_0 = arith.constant 0 : i32
    return %c0_i32, %arg0 : i32, i32
  }
  func.func @transform_1(%arg0: i32) -> (i32, i32) {
    %c0_i32 = arith.constant 0 : i32
    %c0_i32_0 = arith.constant 0 : i32
    return %c0_i32, %arg0 : i32, i32
  }
}

</mosaic_0001>

<llo_original>
// kernel: tpu_custom_call.1
$region0: #{tpu_custom_call.1}
  #allocation0 [shape = 'u32[]', space=smem, size = 0x4, offset = 0x4, fixed_abs, tag = 'smem constant byte address 0x4 - core index']
  #allocation1 [shape = 'u32[72,128]{1,0:T(1,128)}', space=vmem, size = 0x9000, scoped, tag = 'internal scratch']
  %s0 = inlined_call_operand.hbm [shape: f32[8,1000], index: 0, kind: input, shape index: {}]
  %s1 = inlined_call_operand.hbm [shape: f32[8,1000], index: 1, kind: output, shape index: {}]
  %s2 = sld [smem:[#allocation0]]
  $region41: #{tpu_custom_call.1} parent=0
    _
  %s4 = ssub.s32 1, %s2
  %s5 = scalar_select 0, %s4, %s2
  $region1: #{tpu_custom_call.1} parent=0
    #allocation2 [shape = 'u8[16384]{0}', space=vmem, size = 0x4000, scoped, tag = 'input window, operand 0']
    #allocation3 [shape = 's32[2]{0}', space=sflag, size = 0x8, scoped, tag = 'scoped memory for tpu_custom_call.1']
    #allocation4 [shape = 's32[2]{0}', space=sflag, size = 0x8, scoped, tag = 'scoped memory for tpu_custom_call.1']
    #allocation5 [shape = 'u8[16384]{0}', space=vmem, size = 0x4000, scoped, tag = 'output window, operand 0']
    %6 = vsyncpa [#allocation3], 0
    %s7 = scalar_lea.sflag [#allocation3], 1
    %8 = vsyncpa %s7, 0
    %9 = vsyncpa [#allocation4], 0
    %s10 = scalar_lea.sflag [#allocation4], 1
    %11 = vsyncpa %s10, 0
    loop: start=0, step=1, limit=6
    $region2: #{tpu_custom_call.1} parent=1 // loop_pre_header
      _
    $region3: #{tpu_custom_call.1} parent=1 // loop_header
      %s13 = sphi 0, %s17
      %p14 = scmp.ge.s32.totalorder %s13, 6
      %s23 = sphi 0, %s25
      %s26 = sphi 0, %s23
      %s27 = sphi 0, %s26
      %s43 = sphi 0, %s27
      %s49 = sphi 0, %s51
      %s52 = sphi 0, %s49
      %s53 = sphi 0, %s52
      %s69 = sphi 0, %s53
    $region4: #{tpu_custom_call.1} parent=1 // loop_header_branch
      %16 = sbr.rel (%p14) target = $region8
    $region5: #{tpu_custom_call.1} parent=1 // loop_body
      %s18 = ssub.s32 %s13, 1
      %s19 = ssub.s32 %s13, 2
      %s20 = sadd.s32 %s13, 1
      %s21 = ssub.s32 %s13, %s20
      %p22 = scmp.eq.s32.totalorder %s21, 0
      %s24 = sadd.s32 %s23, 1
      %s25 = scalar_select %p22, %s23, %s24
      %p28 = pneg %p22
      %p29 = scmp.eq.s32.totalorder %s13, 3
      %p30 = por %p28, %p29
      %p31 = scmp.ne.s32.totalorder %s23, %s26
      %p32 = scmp.eq.s32.totalorder %s13, 0
      %p33 = por %p31, %p32
      %p34 = scmp.ne.s32.totalorder %s23, %s26
      %p35 = scmp.eq.s32.totalorder %s18, 3
      %p36 = por %p34, %p35
      %p37 = scmp.ne.s32.totalorder %s26, %s27
      %p38 = scmp.eq.s32.totalorder %s18, 0
      %p39 = por %p37, %p38
      %p40 = scmp.ne.s32.totalorder %s26, %s27
      %p41 = scmp.eq.s32.totalorder %s19, 3
      %p42 = por %p40, %p41
      %p44 = scmp.ne.s32.totalorder %s27, %s43
      %p45 = scmp.eq.s32.totalorder %s19, 0
      %p46 = por %p44, %p45
      %s47 = ssub.s32 %s13, %s20
      %p48 = scmp.eq.s32.totalorder %s47, 0
      %s50 = sadd.s32 %s49, 1
      %s51 = scalar_select %p48, %s49, %s50
      %p54 = pneg %p48
      %p55 = scmp.eq.s32.totalorder %s13, 3
      %p56 = por %p54, %p55
      %p57 = scmp.ne.s32.totalorder %s49, %s52
      %p58 = scmp.eq.s32.totalorder %s13, 0
      %p59 = por %p57, %p58
      %p60 = scmp.ne.s32.totalorder %s49, %s52
      %p61 = scmp.eq.s32.totalorder %s18, 3
      %p62 = por %p60, %p61
      %p63 = scmp.ne.s32.totalorder %s52, %s53
      %p64 = scmp.eq.s32.totalorder %s18, 0
      %p65 = por %p63, %p64
      %p66 = scmp.ne.s32.totalorder %s52, %s53
      %p67 = scmp.eq.s32.totalorder %s19, 3
      %p68 = por %p66, %p67
      %p70 = scmp.ne.s32.totalorder %s53, %s69
      %p71 = scmp.eq.s32.totalorder %s19, 0
      %p72 = por %p70, %p71
      %p73 = scmp.le.s32.totalorder 1, %s13
      %p74 = scmp.lt.s32.totalorder %s13, 5
      %p75 = pnand %p73, %p74
      %p76 = pneg %p75
      // Predicated region
      $region9: #{tpu_custom_call.1} parent=5 // pred_check
        _
      $region10: #{tpu_custom_call.1} parent=5 // pred_check_branch
        %78 = sbr.rel (%p75) target = $region12
      $region11: #{tpu_custom_call.1} parent=5 // pred_region
        %s79 = ssub.s32 %s13, 1
      $region12: #{tpu_custom_call.1} parent=5 // pred_fallthru
        _
      %p80 = scmp.lt.s32.totalorder %s13, 4
      // Predicated region
      $region13: #{tpu_custom_call.1} parent=5 // pred_check
        %p81 = pneg %p80
      $region14: #{tpu_custom_call.1} parent=5 // pred_check_branch
        %83 = sbr.rel (%p81) target = $region16
      $region15: #{tpu_custom_call.1} parent=5 // pred_region
        // Predicated region
        $region17: #{tpu_custom_call.1} parent=15 // pred_check
          %p84 = pneg %p33
        $region18: #{tpu_custom_call.1} parent=15 // pred_check_branch
          %86 = sbr.rel (%p84) target = $region20
        $region19: #{tpu_custom_call.1} parent=15 // pred_region
          %s87 = sand.u32 %s23, 1
          %s88 = scalar_lea.sflag [#allocation3], %s87
          %s89 = sand.u32 %s23, 1
          %s90 = smul.addr %s89, 16
          %s91 = scalar_lea.vmem [#allocation2], %s90
          %s92 = smul.u32 2, %s13
          %94 = vsyncadd %s88, 0
          %s95 = smul.addr %s92, 8
          %s96 = scalar_lea.hbm %s0, %s95
          %s98 = sshll.u32 %s96, 4
          %s99 = int_to_ptr.hbm [resolvable:$true] %s98
          %s100 = sshll.u32 %s91, 4
          %s101 = int_to_ptr.vmem [resolvable:$true] %s100
          %103 = dma.hbm_to_vmem [thread:$0]  %s99, 256, %s101, %s88
        $region20: #{tpu_custom_call.1} parent=15 // pred_fallthru
          _
      $region16: #{tpu_custom_call.1} parent=5 // pred_fallthru
        _
      %p104 = scmp.le.s32.totalorder 1, %s13
      %p105 = scmp.lt.s32.totalorder %s13, 5
      %p106 = pnand %p104, %p105
      %p107 = pneg %p106
      // Predicated region
      $region21: #{tpu_custom_call.1} parent=5 // pred_check
        _
      $region22: #{tpu_custom_call.1} parent=5 // pred_check_branch
        %109 = sbr.rel (%p106) target = $region24
      $region23: #{tpu_custom_call.1} parent=5 // pred_region
        %s110 = ssub.s32 %s13, 1
        %s111 = sand.u32 %s26, 1
        %s112 = scalar_lea.sflag [#allocation3], %s111
        %s113 = sand.u32 %s26, 1
        %s114 = smul.addr %s113, 16
        %s115 = scalar_lea.vmem [#allocation2], %s114
        // Predicated region
        $region25: #{tpu_custom_call.1} parent=23 // pred_check
          %p116 = pneg %p39
        $region26: #{tpu_custom_call.1} parent=23 // pred_check_branch
          %118 = sbr.rel (%p116) target = $region28
        $region27: #{tpu_custom_call.1} parent=23 // pred_region
          %120 = dma.done %s112, 256
        $region28: #{tpu_custom_call.1} parent=23 // pred_fallthru
          _
        %s121 = sand.u32 %s26, 1
        %s122 = scalar_lea.sflag [#allocation3], %s121
        %s123 = sand.u32 %s26, 1
        %s124 = smul.addr %s123, 16
        %s125 = scalar_lea.vmem [#allocation2], %s124
        %p126 = pneg %p39
        %p127 = pneg %p36
        %p128 = pneg %p65
        %p129 = pneg %p62
        %s130 = sand.u32 %s52, 1
        %s131 = scalar_lea.sflag [#allocation4], %s130
        %s132 = sand.u32 %s52, 1
        %s133 = smul.addr %s132, 16
        %s134 = scalar_lea.vmem [#allocation5], %s133
        %s135 = smul.u32 2, %s18
        %s136 = smul.u32 2, %s18
        %v137 = vld [vmem:[%s115] sm:$0xff]
        %v138 = vld [vmem:[%s115 + $0x8] sm:$0xff]
        %vm139 = vcmp.ne.f32.partialorder %v137, 2.0
        %vm140 = vcmp.ne.f32.partialorder %v138, 2.0
        %vm141 = vcmp.ne.f32.partialorder %v137, 3.0
        %vm142 = vcmp.ne.f32.partialorder %v138, 3.0
        %vm143 = vmand %vm139, %vm141
        %vm144 = vmand %vm140, %vm142
        %vm145 = vcmp.ne.f32.partialorder %v137, 4.0
        %vm146 = vcmp.ne.f32.partialorder %v138, 4.0
        %vm147 = vmand %vm143, %vm145
        %vm148 = vmand %vm144, %vm146
        %v149 = vsel %vm147, 1, 0
        %v150 = vsel %vm148, 1, 0
        %v151 = vcvt.s32.f32 %v149
        %v152 = vcvt.s32.f32 %v150
        %v153 = vperm.slane %v151, 7
        %v154 = vperm.slane %v152, 7
        %v155 = vmul.f32 %v137, %v153
        %v156 = vmul.f32 %v138, %v154
        %v157 = vmul.f32 %v137, %v151
        %v158 = vmul.f32 %v138, %v152
        %v161 = vrot.slane %v151, 2
        %v162 = vrot.slane %v152, 2
        %v165 = vmul.f32 %v137, %v161
        %v166 = vmul.f32 %v138, %v162
        %v169 = vrot.slane %v157, 3
        %v170 = vrot.slane %v158, 3
        %v173 = vrot.slane %v151, 1
        %v174 = vrot.slane %v152, 1
        %vm177 = vcmask 1043456
        %v178 = vsel %vm177, %v155, %v169
        %v179 = vsel %vm177, %v156, %v170
        %vm180 = vcmask 1044480
        %v181 = vsel %vm180, %v178, %v165
        %v182 = vsel %vm180, %v179, %v166
        %vm183 = vcmask 1045504
        %v184 = vsel %vm183, %v181, %v173
        %v185 = vsel %vm183, %v182, %v174
        %vm186 = vcmask 1046528
        %v187 = vsel %vm186, %v184, 0.0
        %v188 = vsel %vm186, %v185, 0.0
        %189 = vst [vmem:[%s134] sm:$0xff] %v187
        %190 = vst [vmem:[%s134 + $0x8] sm:$0xff] %v188
        %s191 = sand.u32 %s52, 1
        %s192 = scalar_lea.sflag [#allocation4], %s191
        %s193 = sand.u32 %s52, 1
        %s194 = smul.addr %s193, 16
        %s195 = scalar_lea.vmem [#allocation5], %s194
        // Predicated region
        $region29: #{tpu_custom_call.1} parent=23 // pred_check
          %p196 = pneg %p62
        $region30: #{tpu_custom_call.1} parent=23 // pred_check_branch
          %198 = sbr.rel (%p196) target = $region32
        $region31: #{tpu_custom_call.1} parent=23 // pred_region
          %s199 = smul.u32 2, %s18
          %201 = vsyncadd %s192, 0
          %s202 = smul.addr %s199, 8
          %s203 = scalar_lea.hbm %s1, %s202
          %s205 = sshll.u32 %s195, 4
          %s206 = int_to_ptr.vmem [resolvable:$true] %s205
          %s207 = sshll.u32 %s203, 4
          %s208 = int_to_ptr.hbm [resolvable:$true] %s207
          %210 = dma.vmem_to_hbm [thread:$0]  %s206, 256, %s208, %s192
        $region32: #{tpu_custom_call.1} parent=23 // pred_fallthru
          _
      $region24: #{tpu_custom_call.1} parent=5 // pred_fallthru
        _
      %p211 = scmp.le.s32.totalorder 2, %s13
      // Predicated region
      $region33: #{tpu_custom_call.1} parent=5 // pred_check
        %p212 = pneg %p211
      $region34: #{tpu_custom_call.1} parent=5 // pred_check_branch
        %214 = sbr.rel (%p212) target = $region36
      $region35: #{tpu_custom_call.1} parent=5 // pred_region
        %s215 = ssub.s32 %s13, 2
        // Predicated region
        $region37: #{tpu_custom_call.1} parent=35 // pred_check
          %p216 = pneg %p68
        $region38: #{tpu_custom_call.1} parent=35 // pred_check_branch
          %218 = sbr.rel (%p216) target = $region40
        $region39: #{tpu_custom_call.1} parent=35 // pred_region
          %s219 = sand.u32 %s53, 1
          %s220 = scalar_lea.sflag [#allocation4], %s219
          %s221 = sand.u32 %s53, 1
          %s222 = smul.addr %s221, 16
          %s223 = scalar_lea.vmem [#allocation5], %s222
          %225 = dma.done %s220, 256
        $region40: #{tpu_custom_call.1} parent=35 // pred_fallthru
          _
      $region36: #{tpu_custom_call.1} parent=5 // pred_fallthru
        _
    $region6: #{tpu_custom_call.1} parent=1 // loop_footer
      %s17 = sadd.s32 1, %s13
    $region7: #{tpu_custom_call.1} parent=1 // loop_footer_branch
      %12 = sbr.rel target = $region3
    $region8: #{tpu_custom_call.1} parent=1 // loop_exit
      _
    %226 = vsyncpa [#allocation3], 1
    %s227 = scalar_lea.sflag [#allocation3], 1
    %228 = vsyncpa %s227, 1
    %229 = vsyncpa [#allocation4], 1
    %s230 = scalar_lea.sflag [#allocation4], 1
    %231 = vsyncpa %s230, 1

</llo_original>
